<compile_context>
chip_gen: v6e
topology: v6e:2x2x1
jax: 0.10.0
libtpu: 0.0.40
codegen_flags: <defaults>
</compile_context>

<pallas_src>
import jax
import jax.numpy as jnp
from jax.experimental import pallas as pl
from jax.experimental.pallas import tpu as pltpu

EPS = 1e-5


def _round_up(n, m):
    return (n + m - 1) // m * m


def _vmem_capacity_bytes():
    try:
        return int(pltpu.get_tpu_info().vmem_capacity_bytes)
    except Exception:
        return 64 << 20  # conservative fallback (v7x per-TC physical VMEM)


def _make_kernel(h1, h2, d, offs):
    """Fused kernel; offs are static lane-aligned offsets into the packed
    per-feature row-vector operand (g1, be1, g2, be2, b3)."""
    o_g1, o_be1, o_g2, o_be2, o_b3 = offs

    def kernel(x_ref, w1_ref, w2_ref, w3_ref, rows_ref, o_ref):
        x = x_ref[...]
        xf = x if x.dtype == jnp.float32 else x.astype(jnp.float32)
        xb = x.astype(jnp.bfloat16)                       # bf16 MXU operand
        inv_n = 1.0 / x_ref.shape[0]

        def bn_relu(h, off_g, off_b, width):
            # training-mode BN (two-pass stats, gamma folded into the scale),
            # f32 statistics; result cast to bf16 for the next matmul.
            g = rows_ref[:, off_g:off_g + width]          # [1, width] f32
            be = rows_ref[:, off_b:off_b + width]         # [1, width] f32
            mu = jnp.sum(h, axis=0, keepdims=True) * inv_n
            hc = h - mu
            var = jnp.sum(hc * hc, axis=0, keepdims=True) * inv_n
            scale = g * jax.lax.rsqrt(var + EPS)          # [1, width]
            out = jnp.maximum(hc * scale + be, 0.0)
            return out.astype(jnp.bfloat16)

        # fc1 (bias dropped: cancelled by BN mean subtraction) -> BN1 -> ReLU
        h = jnp.dot(xb, w1_ref[...], preferred_element_type=jnp.float32)
        h = bn_relu(h, o_g1, o_be1, h1)

        # fc2 (bias dropped) -> BN2 -> ReLU
        h = jnp.dot(h, w2_ref[...], preferred_element_type=jnp.float32)
        h = bn_relu(h, o_g2, o_be2, h2)

        # fc3 + bias + residual (f32)
        b3 = rows_ref[:, o_b3:o_b3 + d]                   # [1, d] f32
        out = jnp.dot(h, w3_ref[...], preferred_element_type=jnp.float32)
        o_ref[...] = (out + b3 + xf).astype(o_ref.dtype)

    return kernel


def residual_block(x, params):
    """x: [N, D]. params: dict from init_params. Returns [N, D]."""
    n, d = x.shape
    w1 = params["w1"].astype(jnp.bfloat16)
    w2 = params["w2"].astype(jnp.bfloat16)
    w3 = params["w3"].astype(jnp.bfloat16)
    h1, h2 = w1.shape[1], w2.shape[1]

    # TODO(synk): pad d/h1/h2 to multiples of 128 and n to a multiple of 8 when
    # callers pass non-lane-dense shapes (currently still correct, just slower).

    # Pack the tiny per-feature row vectors into one operand; pad each segment
    # to a 128-lane boundary so the in-kernel static slices stay lane-aligned.
    segs = (params["g1"], params["be1"], params["g2"], params["be2"], params["b3"])
    padded, offs, cursor = [], [], 0
    for s in segs:
        s = s.reshape(1, -1).astype(jnp.float32)
        width = s.shape[1]
        pw = _round_up(width, 128)
        padded.append(jnp.pad(s, ((0, 0), (0, pw - width))))
        offs.append(cursor)
        cursor += pw
    rows = jnp.concatenate(padded, axis=1)                # [1, cursor] f32

    args = (x, w1, w2, w3, rows)

    # Single-block design: everything resident in VMEM, no pipeline buffers.
    in_bytes = sum(int(a.size) * a.dtype.itemsize for a in args)
    out_bytes = int(x.size) * x.dtype.itemsize
    act_bytes = 6 * n * (h1 + h2)                         # f32 + bf16 intermediates
    need = in_bytes + out_bytes + 2 * act_bytes + (4 << 20)
    cap = int(0.75 * _vmem_capacity_bytes())              # ~48 MiB v7x, ~96 MiB v5e/v6e
    if need > cap:
        # TODO(synk): two-phase N-tiled grid with resident weights and
        # cross-tile BN sum/sumsq accumulation instead of raising.
        raise NotImplementedError(
            "problem too large for the single-VMEM-block ResidualBlock kernel")
    vmem_limit = int(min(max(need, 32 << 20), cap))

    kernel = _make_kernel(h1, h2, d, tuple(offs))
    vmem = pltpu.MemorySpace.VMEM

    cost = pl.CostEstimate(
        flops=2 * n * (d * h1 + h1 * h2 + h2 * d),
        transcendentals=2 * (h1 + h2),
        bytes_accessed=in_bytes + out_bytes,
    )

    return pl.pallas_call(
        kernel,
        in_specs=[pl.BlockSpec(memory_space=vmem) for _ in args],
        out_specs=pl.BlockSpec(memory_space=vmem),
        out_shape=jax.ShapeDtypeStruct((n, d), x.dtype),
        compiler_params=pltpu.CompilerParams(vmem_limit_bytes=vmem_limit),
        cost_estimate=cost,
    )(*args)


def init_params(key, input_dim, hidden1_dim, hidden2_dim):
    """nn.Linear default init (uniform +-1/sqrt(fan_in)); BN gamma=1, beta=0.
    b1/b2 are kept (to mirror the PyTorch module / reference) but are NOT
    passed to the kernel: they are mathematically cancelled by training-mode BN."""
    ks = jax.random.split(key, 6)

    def linear(kw, kb, fan_in, fan_out):
        bound = 1.0 / jnp.sqrt(fan_in)
        w = jax.random.uniform(kw, (fan_in, fan_out), jnp.float32, -bound, bound)
        b = jax.random.uniform(kb, (1, fan_out), jnp.float32, -bound, bound)
        return w, b

    w1, b1 = linear(ks[0], ks[1], input_dim, hidden1_dim)
    w2, b2 = linear(ks[2], ks[3], hidden1_dim, hidden2_dim)
    w3, b3 = linear(ks[4], ks[5], hidden2_dim, input_dim)
    return dict(
        w1=w1, b1=b1,
        g1=jnp.ones((1, hidden1_dim), jnp.float32),
        be1=jnp.zeros((1, hidden1_dim), jnp.float32),
        w2=w2, b2=b2,
        g2=jnp.ones((1, hidden2_dim), jnp.float32),
        be2=jnp.zeros((1, hidden2_dim), jnp.float32),
        w3=w3, b3=b3,
    )


def _reference(x, p):
    """Pure-JAX f32 mirror of the PyTorch forward (training-mode BN, biases kept)."""
    h = x @ p["w1"] + p["b1"]
    mu = h.mean(0, keepdims=True)
    var = ((h - mu) ** 2).mean(0, keepdims=True)
    h = jnp.maximum(p["g1"] * (h - mu) / jnp.sqrt(var + EPS) + p["be1"], 0.0)
    h = h @ p["w2"] + p["b2"]
    mu = h.mean(0, keepdims=True)
    var = ((h - mu) ** 2).mean(0, keepdims=True)
    h = jnp.maximum(p["g2"] * (h - mu) / jnp.sqrt(var + EPS) + p["be2"], 0.0)
    return h @ p["w3"] + p["b3"] + x


if __name__ == "__main__":
    # Lane/sublane-dense shapes; N=128 fills the MXU M dimension.
    N, D, H1, H2 = 128, 128, 256, 256
    key = jax.random.PRNGKey(0)
    kx, kp = jax.random.split(key)
    x = jax.random.normal(kx, (N, D), jnp.float32)
    params = init_params(kp, D, H1, H2)

    out = residual_block(x, params)
    out = jax.block_until_ready(out)

    ref = _reference(x, params)
    assert out.shape == (N, D)
    # bf16 matmul operands -> loosened tolerance vs. the f32 reference.
    assert jnp.allclose(out, ref, atol=3e-2, rtol=3e-2), (
        float(jnp.max(jnp.abs(out - ref))))
    print("KERNEL_OK")
</pallas_src>

<mosaic_0001>
module attributes {stable_mosaic.version = 11 : i64} {
  func.func @kernel(%arg0: memref<128x128xf32, #tpu.memory_space<vmem>>, %arg1: memref<128x256xbf16, #tpu.memory_space<vmem>>, %arg2: memref<256x256xbf16, #tpu.memory_space<vmem>>, %arg3: memref<256x128xbf16, #tpu.memory_space<vmem>>, %arg4: memref<1x1152xf32, #tpu.memory_space<vmem>>, %arg5: memref<128x128xf32, #tpu.memory_space<vmem>>) attributes {dimension_semantics = [], scalar_prefetch = 0 : i64, scratch_operands = 0 : i64, tpu.core_type = #tpu.core_type<tc>} {
    %c0 = arith.constant 0 : index
    %c0_0 = arith.constant 0 : index
    %0 = vector.load %arg0[%c0, %c0_0] : memref<128x128xf32, #tpu.memory_space<vmem>>, vector<128x128xf32>
    %1 = arith.truncf %0 : vector<128x128xf32> to vector<128x128xbf16>
    %c0_1 = arith.constant 0 : index
    %c0_2 = arith.constant 0 : index
    %2 = vector.load %arg1[%c0_1, %c0_2] : memref<128x256xbf16, #tpu.memory_space<vmem>>, vector<128x256xbf16>
    %cst = arith.constant dense<0.000000e+00> : vector<128x256xf32>
    %3 = tpu.matmul %1, %2, %cst {dimension_numbers = #tpu.dot_dimension_numbers<[1], [0], [0], [1], [0, 0, 1, 1], [], []>} : vector<128x128xbf16>, vector<128x256xbf16>, vector<128x256xf32> -> vector<128x256xf32>
    %c0_3 = arith.constant 0 : index
    %c0_4 = arith.constant 0 : index
    %4 = vector.load %arg4[%c0_3, %c0_4] : memref<1x1152xf32, #tpu.memory_space<vmem>>, vector<1x256xf32>
    %c0_5 = arith.constant 0 : index
    %c256 = arith.constant 256 : index
    %5 = vector.load %arg4[%c0_5, %c256] : memref<1x1152xf32, #tpu.memory_space<vmem>>, vector<1x256xf32>
    %cst_6 = arith.constant dense<0.000000e+00> : vector<256xf32>
    %6 = vector.multi_reduction <add>, %3, %cst_6 [0] : vector<128x256xf32> to vector<256xf32>
    %7 = vector.shape_cast %6 : vector<256xf32> to vector<1x256xf32>
    %cst_7 = arith.constant 7.812500e-03 : f32
    %8 = vector.broadcast %cst_7 : f32 to vector<1x256xf32>
    %9 = arith.mulf %7, %8 : vector<1x256xf32>
    %10 = vector.broadcast %9 : vector<1x256xf32> to vector<128x256xf32>
    %11 = arith.subf %3, %10 : vector<128x256xf32>
    %12 = arith.mulf %11, %11 : vector<128x256xf32>
    %cst_8 = arith.constant dense<0.000000e+00> : vector<256xf32>
    %13 = vector.multi_reduction <add>, %12, %cst_8 [0] : vector<128x256xf32> to vector<256xf32>
    %14 = vector.shape_cast %13 : vector<256xf32> to vector<1x256xf32>
    %cst_9 = arith.constant 7.812500e-03 : f32
    %15 = vector.broadcast %cst_9 : f32 to vector<1x256xf32>
    %16 = arith.mulf %14, %15 : vector<1x256xf32>
    %cst_10 = arith.constant 9.99999974E-6 : f32
    %17 = vector.broadcast %cst_10 : f32 to vector<1x256xf32>
    %18 = arith.addf %16, %17 : vector<1x256xf32>
    %19 = math.rsqrt %18 : vector<1x256xf32>
    %20 = arith.mulf %4, %19 : vector<1x256xf32>
    %21 = vector.broadcast %20 : vector<1x256xf32> to vector<128x256xf32>
    %22 = arith.mulf %11, %21 : vector<128x256xf32>
    %23 = vector.broadcast %5 : vector<1x256xf32> to vector<128x256xf32>
    %24 = arith.addf %22, %23 : vector<128x256xf32>
    %cst_11 = arith.constant 0.000000e+00 : f32
    %25 = vector.broadcast %cst_11 : f32 to vector<128x256xf32>
    %26 = arith.maximumf %24, %25 : vector<128x256xf32>
    %27 = arith.truncf %26 : vector<128x256xf32> to vector<128x256xbf16>
    %c0_12 = arith.constant 0 : index
    %c0_13 = arith.constant 0 : index
    %28 = vector.load %arg2[%c0_12, %c0_13] : memref<256x256xbf16, #tpu.memory_space<vmem>>, vector<256x256xbf16>
    %cst_14 = arith.constant dense<0.000000e+00> : vector<128x256xf32>
    %29 = tpu.matmul %27, %28, %cst_14 {dimension_numbers = #tpu.dot_dimension_numbers<[1], [0], [0], [1], [0, 0, 1, 1], [], []>} : vector<128x256xbf16>, vector<256x256xbf16>, vector<128x256xf32> -> vector<128x256xf32>
    %c0_15 = arith.constant 0 : index
    %c512 = arith.constant 512 : index
    %30 = vector.load %arg4[%c0_15, %c512] : memref<1x1152xf32, #tpu.memory_space<vmem>>, vector<1x256xf32>
    %c0_16 = arith.constant 0 : index
    %c768 = arith.constant 768 : index
    %31 = vector.load %arg4[%c0_16, %c768] : memref<1x1152xf32, #tpu.memory_space<vmem>>, vector<1x256xf32>
    %cst_17 = arith.constant dense<0.000000e+00> : vector<256xf32>
    %32 = vector.multi_reduction <add>, %29, %cst_17 [0] : vector<128x256xf32> to vector<256xf32>
    %33 = vector.shape_cast %32 : vector<256xf32> to vector<1x256xf32>
    %cst_18 = arith.constant 7.812500e-03 : f32
    %34 = vector.broadcast %cst_18 : f32 to vector<1x256xf32>
    %35 = arith.mulf %33, %34 : vector<1x256xf32>
    %36 = vector.broadcast %35 : vector<1x256xf32> to vector<128x256xf32>
    %37 = arith.subf %29, %36 : vector<128x256xf32>
    %38 = arith.mulf %37, %37 : vector<128x256xf32>
    %cst_19 = arith.constant dense<0.000000e+00> : vector<256xf32>
    %39 = vector.multi_reduction <add>, %38, %cst_19 [0] : vector<128x256xf32> to vector<256xf32>
    %40 = vector.shape_cast %39 : vector<256xf32> to vector<1x256xf32>
    %cst_20 = arith.constant 7.812500e-03 : f32
    %41 = vector.broadcast %cst_20 : f32 to vector<1x256xf32>
    %42 = arith.mulf %40, %41 : vector<1x256xf32>
    %cst_21 = arith.constant 9.99999974E-6 : f32
    %43 = vector.broadcast %cst_21 : f32 to vector<1x256xf32>
    %44 = arith.addf %42, %43 : vector<1x256xf32>
    %45 = math.rsqrt %44 : vector<1x256xf32>
    %46 = arith.mulf %30, %45 : vector<1x256xf32>
    %47 = vector.broadcast %46 : vector<1x256xf32> to vector<128x256xf32>
    %48 = arith.mulf %37, %47 : vector<128x256xf32>
    %49 = vector.broadcast %31 : vector<1x256xf32> to vector<128x256xf32>
    %50 = arith.addf %48, %49 : vector<128x256xf32>
    %cst_22 = arith.constant 0.000000e+00 : f32
    %51 = vector.broadcast %cst_22 : f32 to vector<128x256xf32>
    %52 = arith.maximumf %50, %51 : vector<128x256xf32>
    %53 = arith.truncf %52 : vector<128x256xf32> to vector<128x256xbf16>
    %c0_23 = arith.constant 0 : index
    %c1024 = arith.constant 1024 : index
    %54 = vector.load %arg4[%c0_23, %c1024] : memref<1x1152xf32, #tpu.memory_space<vmem>>, vector<1x128xf32>
    %c0_24 = arith.constant 0 : index
    %c0_25 = arith.constant 0 : index
    %55 = vector.load %arg3[%c0_24, %c0_25] : memref<256x128xbf16, #tpu.memory_space<vmem>>, vector<256x128xbf16>
    %cst_26 = arith.constant dense<0.000000e+00> : vector<128x128xf32>
    %56 = tpu.matmul %53, %55, %cst_26 {dimension_numbers = #tpu.dot_dimension_numbers<[1], [0], [0], [1], [0, 0, 1, 1], [], []>} : vector<128x256xbf16>, vector<256x128xbf16>, vector<128x128xf32> -> vector<128x128xf32>
    %57 = vector.broadcast %54 : vector<1x128xf32> to vector<128x128xf32>
    %58 = arith.addf %56, %57 : vector<128x128xf32>
    %59 = arith.addf %58, %0 : vector<128x128xf32>
    %c0_27 = arith.constant 0 : index
    %c0_28 = arith.constant 0 : index
    %60 = vector.load %arg5[%c0_27, %c0_28] : memref<128x128xf32, #tpu.memory_space<vmem>>, vector<128x128xf32>
    tpu.vector_store %arg5[%c0_27, %c0_28], %59 {strides = array<i32>} : memref<128x128xf32, #tpu.memory_space<vmem>>, vector<128x128xf32>,
    return
  }
}

</mosaic_0001>

<llo_original>
// kernel: tpu_custom_call.1
$region0: #{tpu_custom_call.1}
  #allocation0 [shape = 'u32[]', space=smem, size = 0x4, offset = 0x4, fixed_abs, tag = 'smem constant byte address 0x4 - core index']
  #allocation1 [shape = 'u32[144,128]{1,0:T(1,128)}', space=vmem, size = 0x12000, scoped, tag = 'internal scratch']
  %s0 = inlined_call_operand.hbm [shape: f32[128,128], index: 0, kind: input, shape index: {}]
  %s1 = inlined_call_operand.hbm [shape: bf16[128,256], index: 1, kind: input, shape index: {}]
  %s2 = inlined_call_operand.hbm [shape: bf16[256,256], index: 2, kind: input, shape index: {}]
  %s3 = inlined_call_operand.hbm [shape: bf16[256,128], index: 3, kind: input, shape index: {}]
  %s4 = inlined_call_operand.hbm [shape: f32[1,1152], index: 4, kind: input, shape index: {}]
  %s5 = inlined_call_operand.hbm [shape: f32[128,128], index: 5, kind: output, shape index: {}]
  %s6 = sld [smem:[#allocation0]]
  $region50: #{tpu_custom_call.1} parent=0
    _
  %s8 = ssub.s32 1, %s6
  %s9 = scalar_select 0, %s8, %s6
  $region1: #{tpu_custom_call.1} parent=0
    #allocation2 [shape = 'u8[65536]{0}', space=vmem, size = 0x10000, scoped, tag = 'input window, operand 0, single buffered']
    #allocation3 [shape = 's32[1]{0}', space=sflag, size = 0x4, scoped, tag = 'scoped memory for tpu_custom_call.1']
    #allocation4 [shape = 's32[1]{0}', space=sflag, size = 0x4, scoped, tag = 'scoped memory for tpu_custom_call.1']
    #allocation5 [shape = 'u8[65536]{0}', space=vmem, size = 0x10000, scoped, tag = 'input window, operand 1, single buffered']
    #allocation6 [shape = 's32[1]{0}', space=sflag, size = 0x4, scoped, tag = 'scoped memory for tpu_custom_call.1']
    #allocation7 [shape = 'u8[131072]{0}', space=vmem, size = 0x20000, scoped, tag = 'input window, operand 2, single buffered']
    #allocation8 [shape = 'u8[65536]{0}', space=vmem, size = 0x10000, scoped, tag = 'input window, operand 3, single buffered']
    #allocation9 [shape = 's32[1]{0}', space=sflag, size = 0x4, scoped, tag = 'scoped memory for tpu_custom_call.1']
    #allocation10 [shape = 'u8[4608]{0}', space=vmem, size = 0x1400, scoped, tag = 'input window, operand 4, single buffered']
    #allocation11 [shape = 'u8[65536]{0}', space=vmem, size = 0x10000, scoped, tag = 'output window, operand 0, single buffered']
    %10 = vsyncpa [#allocation3], 0
    %11 = vsyncpa [#allocation6], 0
    %12 = vsyncpa [#allocation9], 0
    %13 = vsyncpa [#allocation4], 0
    // Predicated region
    $region2: #{tpu_custom_call.1} parent=1 // pred_check
      _
    $region3: #{tpu_custom_call.1} parent=1 // pred_check_branch
      %15 = sbr.rel (0) target = $region5
    $region4: #{tpu_custom_call.1} parent=1 // pred_region
      %s17 = ssub.s32 2048, 2048
      %18 = vsyncadd [#allocation3], %s17
      %s19 = sshll.u32 [#allocation2], 4
      %s20 = int_to_ptr.vmem [resolvable:$true] %s19
      %25 = dma.hbm_to_vmem [thread:$0]  %s0, 2048, %s20, [#allocation3], 128, 128, 8
    $region5: #{tpu_custom_call.1} parent=1 // pred_fallthru
      _
    // Predicated region
    $region6: #{tpu_custom_call.1} parent=1 // pred_check
      _
    $region7: #{tpu_custom_call.1} parent=1 // pred_check_branch
      %27 = sbr.rel (0) target = $region9
    $region8: #{tpu_custom_call.1} parent=1 // pred_region
      %s29 = ssub.s32 2048, 2048
      %30 = vsyncadd [#allocation6], %s29
      %s31 = sshll.u32 [#allocation5], 4
      %s32 = int_to_ptr.vmem [resolvable:$true] %s31
      %37 = dma.hbm_to_vmem [thread:$0]  %s1, 2048, %s32, [#allocation6], 128, 128, 8
    $region9: #{tpu_custom_call.1} parent=1 // pred_fallthru
      _
    // Predicated region
    $region10: #{tpu_custom_call.1} parent=1 // pred_check
      _
    $region11: #{tpu_custom_call.1} parent=1 // pred_check_branch
      %39 = sbr.rel (0) target = $region13
    $region12: #{tpu_custom_call.1} parent=1 // pred_region
      %s41 = ssub.s32 4096, 4096
      %42 = vsyncadd [#allocation6], %s41
      %s43 = sshll.u32 [#allocation7], 4
      %s44 = int_to_ptr.vmem [resolvable:$true] %s43
      %49 = dma.hbm_to_vmem [thread:$0]  %s2, 4096, %s44, [#allocation6], 128, 128, 8
    $region13: #{tpu_custom_call.1} parent=1 // pred_fallthru
      _
    // Predicated region
    $region14: #{tpu_custom_call.1} parent=1 // pred_check
      _
    $region15: #{tpu_custom_call.1} parent=1 // pred_check_branch
      %51 = sbr.rel (0) target = $region17
    $region16: #{tpu_custom_call.1} parent=1 // pred_region
      %s53 = ssub.s32 2048, 2048
      %54 = vsyncadd [#allocation9], %s53
      %s55 = sshll.u32 [#allocation8], 4
      %s56 = int_to_ptr.vmem [resolvable:$true] %s55
      %61 = dma.hbm_to_vmem [thread:$0]  %s3, 2048, %s56, [#allocation9], 64, 64, 4
    $region17: #{tpu_custom_call.1} parent=1 // pred_fallthru
      _
    // Predicated region
    $region18: #{tpu_custom_call.1} parent=1 // pred_check
      _
    $region19: #{tpu_custom_call.1} parent=1 // pred_check_branch
      %63 = sbr.rel (0) target = $region21
    $region20: #{tpu_custom_call.1} parent=1 // pred_region
      %s65 = ssub.s32 144, 144
      %66 = vsyncadd [#allocation9], %s65
      %s68 = sshll.u32 [#allocation10], 4
      %s69 = int_to_ptr.vmem [resolvable:$true] %s68
      %71 = dma.hbm_to_vmem [thread:$0]  %s4, 144, %s69, [#allocation9]
    $region21: #{tpu_custom_call.1} parent=1 // pred_fallthru
      _
    // Predicated region
    $region22: #{tpu_custom_call.1} parent=1 // pred_check
      _
    $region23: #{tpu_custom_call.1} parent=1 // pred_check_branch
      %73 = sbr.rel (0) target = $region25
    $region24: #{tpu_custom_call.1} parent=1 // pred_region
      %74 = dma.done [#allocation3], 2048
    $region25: #{tpu_custom_call.1} parent=1 // pred_fallthru
      _
    // Predicated region
    $region26: #{tpu_custom_call.1} parent=1 // pred_check
      _
    $region27: #{tpu_custom_call.1} parent=1 // pred_check_branch
      %76 = sbr.rel (0) target = $region29
    $region28: #{tpu_custom_call.1} parent=1 // pred_region
      %77 = dma.done [#allocation6], 2048
    $region29: #{tpu_custom_call.1} parent=1 // pred_fallthru
      _
    // Predicated region
    $region30: #{tpu_custom_call.1} parent=1 // pred_check
      _
    $region31: #{tpu_custom_call.1} parent=1 // pred_check_branch
      %79 = sbr.rel (0) target = $region33
    $region32: #{tpu_custom_call.1} parent=1 // pred_region
      %80 = dma.done [#allocation6], 4096
    $region33: #{tpu_custom_call.1} parent=1 // pred_fallthru
      _
    // Predicated region
    $region34: #{tpu_custom_call.1} parent=1 // pred_check
      _
    $region35: #{tpu_custom_call.1} parent=1 // pred_check_branch
      %82 = sbr.rel (0) target = $region37
    $region36: #{tpu_custom_call.1} parent=1 // pred_region
      %83 = dma.done [#allocation9], 2048
    $region37: #{tpu_custom_call.1} parent=1 // pred_fallthru
      _
    // Predicated region
    $region38: #{tpu_custom_call.1} parent=1 // pred_check
      _
    $region39: #{tpu_custom_call.1} parent=1 // pred_check_branch
      %85 = sbr.rel (0) target = $region41
    $region40: #{tpu_custom_call.1} parent=1 // pred_region
      %86 = dma.done [#allocation9], 144
    $region41: #{tpu_custom_call.1} parent=1 // pred_fallthru
      _
    %v88 = vld [vmem:[#allocation2] sm:$0xff]
    %v89 = vld [vmem:[#allocation2 + $0x8] sm:$0xff]
    %v90 = vld [vmem:[#allocation2 + $0x10] sm:$0xff]
    %v91 = vld [vmem:[#allocation2 + $0x18] sm:$0xff]
    %v92 = vld [vmem:[#allocation2 + $0x20] sm:$0xff]
    %v93 = vld [vmem:[#allocation2 + $0x28] sm:$0xff]
    %v94 = vld [vmem:[#allocation2 + $0x30] sm:$0xff]
    %v95 = vld [vmem:[#allocation2 + $0x38] sm:$0xff]
    %v96 = vld [vmem:[#allocation2 + $0x40] sm:$0xff]
    %v97 = vld [vmem:[#allocation2 + $0x48] sm:$0xff]
    %v98 = vld [vmem:[#allocation2 + $0x50] sm:$0xff]
    %v99 = vld [vmem:[#allocation2 + $0x58] sm:$0xff]
    %v100 = vld [vmem:[#allocation2 + $0x60] sm:$0xff]
    %v101 = vld [vmem:[#allocation2 + $0x68] sm:$0xff]
    %v102 = vld [vmem:[#allocation2 + $0x70] sm:$0xff]
    %v103 = vld [vmem:[#allocation2 + $0x78] sm:$0xff]
    %v104 = vpack.c.bf16 %v89, %v88
    %v105 = vpack.c.bf16 %v91, %v90
    %v106 = vpack.c.bf16 %v93, %v92
    %v107 = vpack.c.bf16 %v95, %v94
    %v108 = vpack.c.bf16 %v97, %v96
    %v109 = vpack.c.bf16 %v99, %v98
    %v110 = vpack.c.bf16 %v101, %v100
    %v111 = vpack.c.bf16 %v103, %v102
    %v112 = vld [vmem:[#allocation5] sm:$0xff]
    %v113 = vld [vmem:[#allocation5 + $0x8] sm:$0xff]
    %v114 = vld [vmem:[#allocation5 + $0x10] sm:$0xff]
    %v115 = vld [vmem:[#allocation5 + $0x18] sm:$0xff]
    %v116 = vld [vmem:[#allocation5 + $0x20] sm:$0xff]
    %v117 = vld [vmem:[#allocation5 + $0x28] sm:$0xff]
    %v118 = vld [vmem:[#allocation5 + $0x30] sm:$0xff]
    %v119 = vld [vmem:[#allocation5 + $0x38] sm:$0xff]
    %v120 = vld [vmem:[#allocation5 + $0x40] sm:$0xff]
    %v121 = vld [vmem:[#allocation5 + $0x48] sm:$0xff]
    %v122 = vld [vmem:[#allocation5 + $0x50] sm:$0xff]
    %v123 = vld [vmem:[#allocation5 + $0x58] sm:$0xff]
    %v124 = vld [vmem:[#allocation5 + $0x60] sm:$0xff]
    %v125 = vld [vmem:[#allocation5 + $0x68] sm:$0xff]
    %v126 = vld [vmem:[#allocation5 + $0x70] sm:$0xff]
    %v127 = vld [vmem:[#allocation5 + $0x78] sm:$0xff]
    %v144 = vunpack.c.l.b16 %v112
    %v145 = vunpack.c.h.b16 %v112
    %v146 = vunpack.c.l.b16 %v113
    %v147 = vunpack.c.h.b16 %v113
    %v148 = vunpack.c.l.b16 %v114
    %v149 = vunpack.c.h.b16 %v114
    %v150 = vunpack.c.l.b16 %v115
    %v151 = vunpack.c.h.b16 %v115
    %v152 = vunpack.c.l.b16 %v116
    %v153 = vunpack.c.h.b16 %v116
    %v154 = vunpack.c.l.b16 %v117
    %v155 = vunpack.c.h.b16 %v117
    %v156 = vunpack.c.l.b16 %v118
    %v157 = vunpack.c.h.b16 %v118
    %v158 = vunpack.c.l.b16 %v119
    %v159 = vunpack.c.h.b16 %v119
    %v160 = vunpack.c.l.b16 %v120
    %v161 = vunpack.c.h.b16 %v120
    %v162 = vunpack.c.l.b16 %v121
    %v163 = vunpack.c.h.b16 %v121
    %v164 = vunpack.c.l.b16 %v122
    %v165 = vunpack.c.h.b16 %v122
    %v166 = vunpack.c.l.b16 %v123
    %v167 = vunpack.c.h.b16 %v123
    %v168 = vunpack.c.l.b16 %v124
    %v169 = vunpack.c.h.b16 %v124
    %v170 = vunpack.c.l.b16 %v125
    %v171 = vunpack.c.h.b16 %v125
    %v172 = vunpack.c.l.b16 %v126
    %v173 = vunpack.c.h.b16 %v126
    %v174 = vunpack.c.l.b16 %v127
    %v175 = vunpack.c.h.b16 %v127
    %v176 = vpack.c.b16 %v146, %v144
    %v177 = vpack.c.b16 %v147, %v145
    %v178 = vpack.c.b16 %v150, %v148
    %v179 = vpack.c.b16 %v151, %v149
    %v180 = vpack.c.b16 %v154, %v152
    %v181 = vpack.c.b16 %v155, %v153
    %v182 = vpack.c.b16 %v158, %v156
    %v183 = vpack.c.b16 %v159, %v157
    %v184 = vpack.c.b16 %v162, %v160
    %v185 = vpack.c.b16 %v163, %v161
    %v186 = vpack.c.b16 %v166, %v164
    %v187 = vpack.c.b16 %v167, %v165
    %v188 = vpack.c.b16 %v170, %v168
    %v189 = vpack.c.b16 %v171, %v169
    %v190 = vpack.c.b16 %v174, %v172
    %v191 = vpack.c.b16 %v175, %v173
    %208 = vmatprep.subr.bf16.mxu0 %v191
    %209 = vmatpush1.bf16.msra.mxu0 %v190
    %210 = vmatprep.subr.bf16.mxu0 %v189
    %211 = vmatpush1.bf16.msra.mxu0 %v188
    %212 = vmatprep.subr.bf16.mxu0 %v187
    %213 = vmatpush1.bf16.msra.mxu0 %v186
    %214 = vmatprep.subr.bf16.mxu0 %v185
    %215 = vmatpush1.bf16.msra.mxu0 %v184
    %216 = vmatprep.subr.bf16.mxu0 %v183
    %217 = vmatpush1.bf16.msra.mxu0 %v182
    %218 = vmatprep.subr.bf16.mxu0 %v181
    %219 = vmatpush1.bf16.msra.mxu0 %v180
    %220 = vmatprep.subr.bf16.mxu0 %v179
    %221 = vmatpush1.bf16.msra.mxu0 %v178
    %222 = vmatprep.subr.bf16.mxu0 %v177
    %223 = vmatpush1.bf16.msra.mxu0 %v176
    %224 = vmatprep.subr.bf16.mxu0 0
    %225 = vmatpush2.bf16.msra.mxu0 0
    %226 = vmatprep.subr.bf16.mxu0 0
    %227 = vmatpush2.bf16.msra.mxu0 0
    %228 = vmatprep.subr.bf16.mxu0 0
    %229 = vmatpush2.bf16.msra.mxu0 0
    %230 = vmatprep.subr.bf16.mxu0 0
    %231 = vmatpush2.bf16.msra.mxu0 0
    %232 = vmatprep.subr.bf16.mxu0 0
    %233 = vmatpush2.bf16.msra.mxu0 0
    %234 = vmatprep.subr.bf16.mxu0 0
    %235 = vmatpush2.bf16.msra.mxu0 0
    %236 = vmatprep.subr.bf16.mxu0 0
    %237 = vmatpush2.bf16.msra.mxu0 0
    %238 = vmatprep.subr.bf16.mxu0 0
    %239 = vmatpush2.bf16.msra.mxu0 0
    %240 = vmatprep.mubr.bf16.mxu0 0
    %241 = vmatmul.mubr.bf16.gmra.mxu0 %v104
    %v242 = vpop.f32.mrf.mxu0
    %v243 = vadd.f32 0.0, %v242
    %v244 = vpop.f32.mrf.mxu0
    %v245 = vadd.f32 0.0, %v244
    %v246 = vpop.f32.mrf.mxu0
    %v247 = vadd.f32 0.0, %v246
    %v248 = vpop.f32.mrf.mxu0
    %v249 = vadd.f32 0.0, %v248
    %250 = vmatprep.mubr.bf16.mxu0 0
    %251 = vmatmul.mubr.bf16.gmra.mxu0 %v105
    %v252 = vpop.f32.mrf.mxu0
    %v253 = vadd.f32 0.0, %v252
    %v254 = vpop.f32.mrf.mxu0
    %v255 = vadd.f32 0.0, %v254
    %v256 = vpop.f32.mrf.mxu0
    %v257 = vadd.f32 0.0, %v256
    %v258 = vpop.f32.mrf.mxu0
    %v259 = vadd.f32 0.0, %v258
    %260 = vmatprep.mubr.bf16.mxu0 0
    %261 = vmatmul.mubr.bf16.gmra.mxu0 %v106
    %v262 = vpop.f32.mrf.mxu0
    %v263 = vadd.f32 0.0, %v262
    %v264 = vpop.f32.mrf.mxu0
    %v265 = vadd.f32 0.0, %v264
    %v266 = vpop.f32.mrf.mxu0
    %v267 = vadd.f32 0.0, %v266
    %v268 = vpop.f32.mrf.mxu0
    %v269 = vadd.f32 0.0, %v268
    %270 = vmatprep.mubr.bf16.mxu0 0
    %271 = vmatmul.mubr.bf16.gmra.mxu0 %v107
    %v272 = vpop.f32.mrf.mxu0
    %v273 = vadd.f32 0.0, %v272
    %v274 = vpop.f32.mrf.mxu0
    %v275 = vadd.f32 0.0, %v274
    %v276 = vpop.f32.mrf.mxu0
    %v277 = vadd.f32 0.0, %v276
    %v278 = vpop.f32.mrf.mxu0
    %v279 = vadd.f32 0.0, %v278
    %280 = vmatprep.mubr.bf16.mxu0 0
    %281 = vmatmul.mubr.bf16.gmra.mxu0 %v108
    %v282 = vpop.f32.mrf.mxu0
    %v283 = vadd.f32 0.0, %v282
    %v284 = vpop.f32.mrf.mxu0
    %v285 = vadd.f32 0.0, %v284
    %v286 = vpop.f32.mrf.mxu0
    %v287 = vadd.f32 0.0, %v286
    %v288 = vpop.f32.mrf.mxu0
    %v289 = vadd.f32 0.0, %v288
    %290 = vmatprep.mubr.bf16.mxu0 0
    %291 = vmatmul.mubr.bf16.gmra.mxu0 %v109
    %v292 = vpop.f32.mrf.mxu0
    %v293 = vadd.f32 0.0, %v292
    %v294 = vpop.f32.mrf.mxu0
    %v295 = vadd.f32 0.0, %v294
    %v296 = vpop.f32.mrf.mxu0
    %v297 = vadd.f32 0.0, %v296
    %v298 = vpop.f32.mrf.mxu0
    %v299 = vadd.f32 0.0, %v298
    %300 = vmatprep.mubr.bf16.mxu0 0
    %301 = vmatmul.mubr.bf16.gmra.mxu0 %v110
    %v302 = vpop.f32.mrf.mxu0
    %v303 = vadd.f32 0.0, %v302
    %v304 = vpop.f32.mrf.mxu0
    %v305 = vadd.f32 0.0, %v304
    %v306 = vpop.f32.mrf.mxu0
    %v307 = vadd.f32 0.0, %v306
    %v308 = vpop.f32.mrf.mxu0
    %v309 = vadd.f32 0.0, %v308
    %310 = vmatprep.mubr.bf16.mxu0 0
    %311 = vmatmul.mubr.bf16.gmra.mxu0 %v111
    %v312 = vpop.f32.mrf.mxu0
    %v313 = vadd.f32 0.0, %v312
    %v314 = vpop.f32.mrf.mxu0
    %v315 = vadd.f32 0.0, %v314
    %v316 = vpop.f32.mrf.mxu0
    %v317 = vadd.f32 0.0, %v316
    %v318 = vpop.f32.mrf.mxu0
    %v319 = vadd.f32 0.0, %v318
    %320 = vdwg.mxu0
    %v321 = vld [vmem:[#allocation10] sm:$0x3]
    %v322 = vld [vmem:[#allocation10 + $0x2] sm:$0x3]
    %v323 = vadd.f32 %v243, %v247
    %v324 = vadd.f32 %v323, %v253
    %v325 = vadd.f32 %v324, %v257
    %v326 = vadd.f32 %v325, %v263
    %v327 = vadd.f32 %v326, %v267
    %v328 = vadd.f32 %v327, %v273
    %v329 = vadd.f32 %v328, %v277
    %v330 = vadd.f32 %v329, %v283
    %v331 = vadd.f32 %v330, %v287
    %v332 = vadd.f32 %v331, %v293
    %v333 = vadd.f32 %v332, %v297
    %v334 = vadd.f32 %v333, %v303
    %v335 = vadd.f32 %v334, %v307
    %v336 = vadd.f32 %v335, %v313
    %v337 = vadd.f32 %v336, %v317
    %v338 = vrot.slane %v337, 4
    %v339 = vadd.f32 %v337, %v338
    %v340 = vrot.slane %v339, 2
    %v341 = vadd.f32 %v339, %v340
    %v342 = vrot.slane %v341, 1
    %v343 = vadd.f32 %v341, %v342
    %v344 = vadd.f32 %v245, %v249
    %v345 = vadd.f32 %v344, %v255
    %v346 = vadd.f32 %v345, %v259
    %v347 = vadd.f32 %v346, %v265
    %v348 = vadd.f32 %v347, %v269
    %v349 = vadd.f32 %v348, %v275
    %v350 = vadd.f32 %v349, %v279
    %v351 = vadd.f32 %v350, %v285
    %v352 = vadd.f32 %v351, %v289
    %v353 = vadd.f32 %v352, %v295
    %v354 = vadd.f32 %v353, %v299
    %v355 = vadd.f32 %v354, %v305
    %v356 = vadd.f32 %v355, %v309
    %v357 = vadd.f32 %v356, %v315
    %v358 = vadd.f32 %v357, %v319
    %v359 = vrot.slane %v358, 4
    %v360 = vadd.f32 %v358, %v359
    %v361 = vrot.slane %v360, 2
    %v362 = vadd.f32 %v360, %v361
    %v363 = vrot.slane %v362, 1
    %v364 = vadd.f32 %v362, %v363
    %v365 = vmul.f32 %v343, 0.0078125
    %v366 = vmul.f32 %v364, 0.0078125
    %v367 = vsub.f32 %v243, %v365
    %v368 = vsub.f32 %v245, %v366
    %v369 = vsub.f32 %v247, %v365
    %v370 = vsub.f32 %v249, %v366
    %v371 = vsub.f32 %v253, %v365
    %v372 = vsub.f32 %v255, %v366
    %v373 = vsub.f32 %v257, %v365
    %v374 = vsub.f32 %v259, %v366
    %v375 = vsub.f32 %v263, %v365
    %v376 = vsub.f32 %v265, %v366
    %v377 = vsub.f32 %v267, %v365
    %v378 = vsub.f32 %v269, %v366
    %v379 = vsub.f32 %v273, %v365
    %v380 = vsub.f32 %v275, %v366
    %v381 = vsub.f32 %v277, %v365
    %v382 = vsub.f32 %v279, %v366
    %v383 = vsub.f32 %v283, %v365
    %v384 = vsub.f32 %v285, %v366
    %v385 = vsub.f32 %v287, %v365
    %v386 = vsub.f32 %v289, %v366
    %v387 = vsub.f32 %v293, %v365
    %v388 = vsub.f32 %v295, %v366
    %v389 = vsub.f32 %v297, %v365
    %v390 = vsub.f32 %v299, %v366
    %v391 = vsub.f32 %v303, %v365
    %v392 = vsub.f32 %v305, %v366
    %v393 = vsub.f32 %v307, %v365
    %v394 = vsub.f32 %v309, %v366
    %v395 = vsub.f32 %v313, %v365
    %v396 = vsub.f32 %v315, %v366
    %v397 = vsub.f32 %v317, %v365
    %v398 = vsub.f32 %v319, %v366
    %v399 = vmul.f32 %v367, %v367
    %v400 = vmul.f32 %v368, %v368
    %v401 = vmul.f32 %v369, %v369
    %v402 = vmul.f32 %v370, %v370
    %v403 = vmul.f32 %v371, %v371
    %v404 = vmul.f32 %v372, %v372
    %v405 = vmul.f32 %v373, %v373
    %v406 = vmul.f32 %v374, %v374
    %v407 = vmul.f32 %v375, %v375
    %v408 = vmul.f32 %v376, %v376
    %v409 = vmul.f32 %v377, %v377
    %v410 = vmul.f32 %v378, %v378
    %v411 = vmul.f32 %v379, %v379
    %v412 = vmul.f32 %v380, %v380
    %v413 = vmul.f32 %v381, %v381
    %v414 = vmul.f32 %v382, %v382
    %v415 = vmul.f32 %v383, %v383
    %v416 = vmul.f32 %v384, %v384
    %v417 = vmul.f32 %v385, %v385
    %v418 = vmul.f32 %v386, %v386
    %v419 = vmul.f32 %v387, %v387
    %v420 = vmul.f32 %v388, %v388
    %v421 = vmul.f32 %v389, %v389
    %v422 = vmul.f32 %v390, %v390
    %v423 = vmul.f32 %v391, %v391
    %v424 = vmul.f32 %v392, %v392
    %v425 = vmul.f32 %v393, %v393
    %v426 = vmul.f32 %v394, %v394
    %v427 = vmul.f32 %v395, %v395
    %v428 = vmul.f32 %v396, %v396
    %v429 = vmul.f32 %v397, %v397
    %v430 = vmul.f32 %v398, %v398
    %v431 = vadd.f32 %v399, %v401
    %v432 = vadd.f32 %v431, %v403
    %v433 = vadd.f32 %v432, %v405
    %v434 = vadd.f32 %v433, %v407
    %v435 = vadd.f32 %v434, %v409
    %v436 = vadd.f32 %v435, %v411
    %v437 = vadd.f32 %v436, %v413
    %v438 = vadd.f32 %v437, %v415
    %v439 = vadd.f32 %v438, %v417
    %v440 = vadd.f32 %v439, %v419
    %v441 = vadd.f32 %v440, %v421
    %v442 = vadd.f32 %v441, %v423
    %v443 = vadd.f32 %v442, %v425
    %v444 = vadd.f32 %v443, %v427
    %v445 = vadd.f32 %v444, %v429
    %v446 = vrot.slane %v445, 4
    %v447 = vadd.f32 %v445, %v446
    %v448 = vrot.slane %v447, 2
    %v449 = vadd.f32 %v447, %v448
    %v450 = vrot.slane %v449, 1
    %v451 = vadd.f32 %v449, %v450
    %v452 = vadd.f32 %v400, %v402
    %v453 = vadd.f32 %v452, %v404
    %v454 = vadd.f32 %v453, %v406
    %v455 = vadd.f32 %v454, %v408
    %v456 = vadd.f32 %v455, %v410
    %v457 = vadd.f32 %v456, %v412
    %v458 = vadd.f32 %v457, %v414
    %v459 = vadd.f32 %v458, %v416
    %v460 = vadd.f32 %v459, %v418
    %v461 = vadd.f32 %v460, %v420
    %v462 = vadd.f32 %v461, %v422
    %v463 = vadd.f32 %v462, %v424
    %v464 = vadd.f32 %v463, %v426
    %v465 = vadd.f32 %v464, %v428
    %v466 = vadd.f32 %v465, %v430
    %v467 = vrot.slane %v466, 4
    %v468 = vadd.f32 %v466, %v467
    %v469 = vrot.slane %v468, 2
    %v470 = vadd.f32 %v468, %v469
    %v471 = vrot.slane %v470, 1
    %v472 = vadd.f32 %v470, %v471
    %v473 = vmul.f32 %v451, 0.0078125
    %v474 = vmul.f32 %v472, 0.0078125
    %v475 = vadd.f32 %v473, 1e-05
    %v476 = vadd.f32 %v474, 1e-05
    %v477 = vrsqrt.pop %v475
    %v478 = vrsqrt.pop %v476
    %v481 = vcombine.low %v477, %v478
    %v483 = vunpack.c.l.s4 1966171168
    %v484 = vunpack.c.0.s8 %v483
    %v485 = vlaneseq
    %v486 = vshrl.u32 %v485, 7
    %v487 = vsub.s32 %v484, %v486
    %v488 = vrot.slane %v481, %v487
    %v490 = vunpack.c.l.s4 1966171168
    %v491 = vunpack.c.0.s8 %v490
    %v492 = vlaneseq
    %v493 = vshrl.u32 %v492, 7
    %v494 = vsub.s32 %v491, %v493
    %v495 = vrot.slane %v488, %v494
    %v497 = vmul.f32 %v321, %v495
    %v499 = vlaneseq
    %v500 = vshrl.u32 %v499, 7
    %v501 = vsub.s32 0, %v500
    %v502 = vrot.slane %v497, %v501
    %v503 = vlaneseq
    %v504 = vshrl.u32 %v503, 7
    %v505 = vsub.s32 1, %v504
    %v506 = vrot.slane %v497, %v505
    %v509 = vmul.f32 %v367, %v502
    %v510 = vmul.f32 %v368, %v506
    %v511 = vmul.f32 %v369, %v502
    %v512 = vmul.f32 %v370, %v506
    %v513 = vmul.f32 %v371, %v502
    %v514 = vmul.f32 %v372, %v506
    %v515 = vmul.f32 %v373, %v502
    %v516 = vmul.f32 %v374, %v506
    %v517 = vmul.f32 %v375, %v502
    %v518 = vmul.f32 %v376, %v506
    %v519 = vmul.f32 %v377, %v502
    %v520 = vmul.f32 %v378, %v506
    %v521 = vmul.f32 %v379, %v502
    %v522 = vmul.f32 %v380, %v506
    %v523 = vmul.f32 %v381, %v502
    %v524 = vmul.f32 %v382, %v506
    %v525 = vmul.f32 %v383, %v502
    %v526 = vmul.f32 %v384, %v506
    %v527 = vmul.f32 %v385, %v502
    %v528 = vmul.f32 %v386, %v506
    %v529 = vmul.f32 %v387, %v502
    %v530 = vmul.f32 %v388, %v506
    %v531 = vmul.f32 %v389, %v502
    %v532 = vmul.f32 %v390, %v506
    %v533 = vmul.f32 %v391, %v502
    %v534 = vmul.f32 %v392, %v506
    %v535 = vmul.f32 %v393, %v502
    %v536 = vmul.f32 %v394, %v506
    %v537 = vmul.f32 %v395, %v502
    %v538 = vmul.f32 %v396, %v506
    %v539 = vmul.f32 %v397, %v502
    %v540 = vmul.f32 %v398, %v506
    %v542 = vlaneseq
    %v543 = vshrl.u32 %v542, 7
    %v544 = vsub.s32 0, %v543
    %v545 = vrot.slane %v322, %v544
    %v546 = vlaneseq
    %v547 = vshrl.u32 %v546, 7
    %v548 = vsub.s32 1, %v547
    %v549 = vrot.slane %v322, %v548
    %v552 = vadd.f32 %v509, %v545
    %v553 = vadd.f32 %v510, %v549
    %v554 = vadd.f32 %v511, %v545
    %v555 = vadd.f32 %v512, %v549
    %v556 = vadd.f32 %v513, %v545
    %v557 = vadd.f32 %v514, %v549
    %v558 = vadd.f32 %v515, %v545
    %v559 = vadd.f32 %v516, %v549
    %v560 = vadd.f32 %v517, %v545
    %v561 = vadd.f32 %v518, %v549
    %v562 = vadd.f32 %v519, %v545
    %v563 = vadd.f32 %v520, %v549
    %v564 = vadd.f32 %v521, %v545
    %v565 = vadd.f32 %v522, %v549
    %v566 = vadd.f32 %v523, %v545
    %v567 = vadd.f32 %v524, %v549
    %v568 = vadd.f32 %v525, %v545
    %v569 = vadd.f32 %v526, %v549
    %v570 = vadd.f32 %v527, %v545
    %v571 = vadd.f32 %v528, %v549
    %v572 = vadd.f32 %v529, %v545
    %v573 = vadd.f32 %v530, %v549
    %v574 = vadd.f32 %v531, %v545
    %v575 = vadd.f32 %v532, %v549
    %v576 = vadd.f32 %v533, %v545
    %v577 = vadd.f32 %v534, %v549
    %v578 = vadd.f32 %v535, %v545
    %v579 = vadd.f32 %v536, %v549
    %v580 = vadd.f32 %v537, %v545
    %v581 = vadd.f32 %v538, %v549
    %v582 = vadd.f32 %v539, %v545
    %v583 = vadd.f32 %v540, %v549
    %v584 = vmax.f32 %v552, 0.0
    %v585 = vmax.f32 %v553, 0.0
    %v586 = vmax.f32 %v554, 0.0
    %v587 = vmax.f32 %v555, 0.0
    %v588 = vmax.f32 %v556, 0.0
    %v589 = vmax.f32 %v557, 0.0
    %v590 = vmax.f32 %v558, 0.0
    %v591 = vmax.f32 %v559, 0.0
    %v592 = vmax.f32 %v560, 0.0
    %v593 = vmax.f32 %v561, 0.0
    %v594 = vmax.f32 %v562, 0.0
    %v595 = vmax.f32 %v563, 0.0
    %v596 = vmax.f32 %v564, 0.0
    %v597 = vmax.f32 %v565, 0.0
    %v598 = vmax.f32 %v566, 0.0
    %v599 = vmax.f32 %v567, 0.0
    %v600 = vmax.f32 %v568, 0.0
    %v601 = vmax.f32 %v569, 0.0
    %v602 = vmax.f32 %v570, 0.0
    %v603 = vmax.f32 %v571, 0.0
    %v604 = vmax.f32 %v572, 0.0
    %v605 = vmax.f32 %v573, 0.0
    %v606 = vmax.f32 %v574, 0.0
    %v607 = vmax.f32 %v575, 0.0
    %v608 = vmax.f32 %v576, 0.0
    %v609 = vmax.f32 %v577, 0.0
    %v610 = vmax.f32 %v578, 0.0
    %v611 = vmax.f32 %v579, 0.0
    %v612 = vmax.f32 %v580, 0.0
    %v613 = vmax.f32 %v581, 0.0
    %v614 = vmax.f32 %v582, 0.0
    %v615 = vmax.f32 %v583, 0.0
    %v616 = vpack.c.bf16 %v586, %v584
    %v617 = vpack.c.bf16 %v587, %v585
    %v618 = vpack.c.bf16 %v590, %v588
    %v619 = vpack.c.bf16 %v591, %v589
    %v620 = vpack.c.bf16 %v594, %v592
    %v621 = vpack.c.bf16 %v595, %v593
    %v622 = vpack.c.bf16 %v598, %v596
    %v623 = vpack.c.bf16 %v599, %v597
    %v624 = vpack.c.bf16 %v602, %v600
    %v625 = vpack.c.bf16 %v603, %v601
    %v626 = vpack.c.bf16 %v606, %v604
    %v627 = vpack.c.bf16 %v607, %v605
    %v628 = vpack.c.bf16 %v610, %v608
    %v629 = vpack.c.bf16 %v611, %v609
    %v630 = vpack.c.bf16 %v614, %v612
    %v631 = vpack.c.bf16 %v615, %v613
    %v632 = vld [vmem:[#allocation7] sm:$0xff]
    %v633 = vld [vmem:[#allocation7 + $0x8] sm:$0xff]
    %v634 = vld [vmem:[#allocation7 + $0x10] sm:$0xff]
    %v635 = vld [vmem:[#allocation7 + $0x18] sm:$0xff]
    %v636 = vld [vmem:[#allocation7 + $0x20] sm:$0xff]
    %v637 = vld [vmem:[#allocation7 + $0x28] sm:$0xff]
    %v638 = vld [vmem:[#allocation7 + $0x30] sm:$0xff]
    %v639 = vld [vmem:[#allocation7 + $0x38] sm:$0xff]
    %v640 = vld [vmem:[#allocation7 + $0x40] sm:$0xff]
    %v641 = vld [vmem:[#allocation7 + $0x48] sm:$0xff]
    %v642 = vld [vmem:[#allocation7 + $0x50] sm:$0xff]
    %v643 = vld [vmem:[#allocation7 + $0x58] sm:$0xff]
    %v644 = vld [vmem:[#allocation7 + $0x60] sm:$0xff]
    %v645 = vld [vmem:[#allocation7 + $0x68] sm:$0xff]
    %v646 = vld [vmem:[#allocation7 + $0x70] sm:$0xff]
    %v647 = vld [vmem:[#allocation7 + $0x78] sm:$0xff]
    %v648 = vld [vmem:[#allocation7 + $0x80] sm:$0xff]
    %v649 = vld [vmem:[#allocation7 + $0x88] sm:$0xff]
    %v650 = vld [vmem:[#allocation7 + $0x90] sm:$0xff]
    %v651 = vld [vmem:[#allocation7 + $0x98] sm:$0xff]
    %v652 = vld [vmem:[#allocation7 + $0xa0] sm:$0xff]
    %v653 = vld [vmem:[#allocation7 + $0xa8] sm:$0xff]
    %v654 = vld [vmem:[#allocation7 + $0xb0] sm:$0xff]
    %v655 = vld [vmem:[#allocation7 + $0xb8] sm:$0xff]
    %v656 = vld [vmem:[#allocation7 + $0xc0] sm:$0xff]
    %v657 = vld [vmem:[#allocation7 + $0xc8] sm:$0xff]
    %v658 = vld [vmem:[#allocation7 + $0xd0] sm:$0xff]
    %v659 = vld [vmem:[#allocation7 + $0xd8] sm:$0xff]
    %v660 = vld [vmem:[#allocation7 + $0xe0] sm:$0xff]
    %v661 = vld [vmem:[#allocation7 + $0xe8] sm:$0xff]
    %v662 = vld [vmem:[#allocation7 + $0xf0] sm:$0xff]
    %v663 = vld [vmem:[#allocation7 + $0xf8] sm:$0xff]
    %v696 = vunpack.c.l.b16 %v632
    %v697 = vunpack.c.h.b16 %v632
    %v698 = vunpack.c.l.b16 %v633
    %v699 = vunpack.c.h.b16 %v633
    %v700 = vunpack.c.l.b16 %v634
    %v701 = vunpack.c.h.b16 %v634
    %v702 = vunpack.c.l.b16 %v635
    %v703 = vunpack.c.h.b16 %v635
    %v704 = vunpack.c.l.b16 %v636
    %v705 = vunpack.c.h.b16 %v636
    %v706 = vunpack.c.l.b16 %v637
    %v707 = vunpack.c.h.b16 %v637
    %v708 = vunpack.c.l.b16 %v638
    %v709 = vunpack.c.h.b16 %v638
    %v710 = vunpack.c.l.b16 %v639
    %v711 = vunpack.c.h.b16 %v639
    %v712 = vunpack.c.l.b16 %v640
    %v713 = vunpack.c.h.b16 %v640
    %v714 = vunpack.c.l.b16 %v641
    %v715 = vunpack.c.h.b16 %v641
    %v716 = vunpack.c.l.b16 %v642
    %v717 = vunpack.c.h.b16 %v642
    %v718 = vunpack.c.l.b16 %v643
    %v719 = vunpack.c.h.b16 %v643
    %v720 = vunpack.c.l.b16 %v644
    %v721 = vunpack.c.h.b16 %v644
    %v722 = vunpack.c.l.b16 %v645
    %v723 = vunpack.c.h.b16 %v645
    %v724 = vunpack.c.l.b16 %v646
    %v725 = vunpack.c.h.b16 %v646
    %v726 = vunpack.c.l.b16 %v647
    %v727 = vunpack.c.h.b16 %v647
    %v728 = vunpack.c.l.b16 %v648
    %v729 = vunpack.c.h.b16 %v648
    %v730 = vunpack.c.l.b16 %v649
    %v731 = vunpack.c.h.b16 %v649
    %v732 = vunpack.c.l.b16 %v650
    %v733 = vunpack.c.h.b16 %v650
    %v734 = vunpack.c.l.b16 %v651
    %v735 = vunpack.c.h.b16 %v651
    %v736 = vunpack.c.l.b16 %v652
    %v737 = vunpack.c.h.b16 %v652
    %v738 = vunpack.c.l.b16 %v653
    %v739 = vunpack.c.h.b16 %v653
    %v740 = vunpack.c.l.b16 %v654
    %v741 = vunpack.c.h.b16 %v654
    %v742 = vunpack.c.l.b16 %v655
    %v743 = vunpack.c.h.b16 %v655
    %v744 = vunpack.c.l.b16 %v656
    %v745 = vunpack.c.h.b16 %v656
    %v746 = vunpack.c.l.b16 %v657
    %v747 = vunpack.c.h.b16 %v657
    %v748 = vunpack.c.l.b16 %v658
    %v749 = vunpack.c.h.b16 %v658
    %v750 = vunpack.c.l.b16 %v659
    %v751 = vunpack.c.h.b16 %v659
    %v752 = vunpack.c.l.b16 %v660
    %v753 = vunpack.c.h.b16 %v660
    %v754 = vunpack.c.l.b16 %v661
    %v755 = vunpack.c.h.b16 %v661
    %v756 = vunpack.c.l.b16 %v662
    %v757 = vunpack.c.h.b16 %v662
    %v758 = vunpack.c.l.b16 %v663
    %v759 = vunpack.c.h.b16 %v663
    %v760 = vpack.c.b16 %v698, %v696
    %v761 = vpack.c.b16 %v699, %v697
    %v762 = vpack.c.b16 %v702, %v700
    %v763 = vpack.c.b16 %v703, %v701
    %v764 = vpack.c.b16 %v706, %v704
    %v765 = vpack.c.b16 %v707, %v705
    %v766 = vpack.c.b16 %v710, %v708
    %v767 = vpack.c.b16 %v711, %v709
    %v768 = vpack.c.b16 %v714, %v712
    %v769 = vpack.c.b16 %v715, %v713
    %v770 = vpack.c.b16 %v718, %v716
    %v771 = vpack.c.b16 %v719, %v717
    %v772 = vpack.c.b16 %v722, %v720
    %v773 = vpack.c.b16 %v723, %v721
    %v774 = vpack.c.b16 %v726, %v724
    %v775 = vpack.c.b16 %v727, %v725
    %v776 = vpack.c.b16 %v730, %v728
    %v777 = vpack.c.b16 %v731, %v729
    %v778 = vpack.c.b16 %v734, %v732
    %v779 = vpack.c.b16 %v735, %v733
    %v780 = vpack.c.b16 %v738, %v736
    %v781 = vpack.c.b16 %v739, %v737
    %v782 = vpack.c.b16 %v742, %v740
    %v783 = vpack.c.b16 %v743, %v741
    %v784 = vpack.c.b16 %v746, %v744
    %v785 = vpack.c.b16 %v747, %v745
    %v786 = vpack.c.b16 %v750, %v748
    %v787 = vpack.c.b16 %v751, %v749
    %v788 = vpack.c.b16 %v754, %v752
    %v789 = vpack.c.b16 %v755, %v753
    %v790 = vpack.c.b16 %v758, %v756
    %v791 = vpack.c.b16 %v759, %v757
    %824 = vmatprep.subr.bf16.mxu0 %v775
    %825 = vmatpush1.bf16.msra.mxu0 %v774
    %826 = vmatprep.subr.bf16.mxu0 %v773
    %827 = vmatpush1.bf16.msra.mxu0 %v772
    %828 = vmatprep.subr.bf16.mxu0 %v771
    %829 = vmatpush1.bf16.msra.mxu0 %v770
    %830 = vmatprep.subr.bf16.mxu0 %v769
    %831 = vmatpush1.bf16.msra.mxu0 %v768
    %832 = vmatprep.subr.bf16.mxu0 %v767
    %833 = vmatpush1.bf16.msra.mxu0 %v766
    %834 = vmatprep.subr.bf16.mxu0 %v765
    %835 = vmatpush1.bf16.msra.mxu0 %v764
    %836 = vmatprep.subr.bf16.mxu0 %v763
    %837 = vmatpush1.bf16.msra.mxu0 %v762
    %838 = vmatprep.subr.bf16.mxu0 %v761
    %839 = vmatpush1.bf16.msra.mxu0 %v760
    %840 = vmatprep.subr.bf16.mxu0 %v791
    %841 = vmatpush2.bf16.msra.mxu0 %v790
    %842 = vmatprep.subr.bf16.mxu0 %v789
    %843 = vmatpush2.bf16.msra.mxu0 %v788
    %844 = vmatprep.subr.bf16.mxu0 %v787
    %845 = vmatpush2.bf16.msra.mxu0 %v786
    %846 = vmatprep.subr.bf16.mxu0 %v785
    %847 = vmatpush2.bf16.msra.mxu0 %v784
    %848 = vmatprep.subr.bf16.mxu0 %v783
    %849 = vmatpush2.bf16.msra.mxu0 %v782
    %850 = vmatprep.subr.bf16.mxu0 %v781
    %851 = vmatpush2.bf16.msra.mxu0 %v780
    %852 = vmatprep.subr.bf16.mxu0 %v779
    %853 = vmatpush2.bf16.msra.mxu0 %v778
    %854 = vmatprep.subr.bf16.mxu0 %v777
    %855 = vmatpush2.bf16.msra.mxu0 %v776
    %856 = vmatprep.mubr.bf16.mxu0 %v617
    %857 = vmatmul.mubr.bf16.gmra.mxu0 %v616
    %v858 = vpop.f32.mrf.mxu0
    %v859 = vadd.f32 0.0, %v858
    %v860 = vpop.f32.mrf.mxu0
    %v861 = vadd.f32 0.0, %v860
    %v862 = vpop.f32.mrf.mxu0
    %v863 = vadd.f32 0.0, %v862
    %v864 = vpop.f32.mrf.mxu0
    %v865 = vadd.f32 0.0, %v864
    %866 = vmatprep.mubr.bf16.mxu0 %v619
    %867 = vmatmul.mubr.bf16.gmra.mxu0 %v618
    %v868 = vpop.f32.mrf.mxu0
    %v869 = vadd.f32 0.0, %v868
    %v870 = vpop.f32.mrf.mxu0
    %v871 = vadd.f32 0.0, %v870
    %v872 = vpop.f32.mrf.mxu0
    %v873 = vadd.f32 0.0, %v872
    %v874 = vpop.f32.mrf.mxu0
    %v875 = vadd.f32 0.0, %v874
    %876 = vmatprep.mubr.bf16.mxu0 %v621
    %877 = vmatmul.mubr.bf16.gmra.mxu0 %v620
    %v878 = vpop.f32.mrf.mxu0
    %v879 = vadd.f32 0.0, %v878
    %v880 = vpop.f32.mrf.mxu0
    %v881 = vadd.f32 0.0, %v880
    %v882 = vpop.f32.mrf.mxu0
    %v883 = vadd.f32 0.0, %v882
    %v884 = vpop.f32.mrf.mxu0
    %v885 = vadd.f32 0.0, %v884
    %886 = vmatprep.mubr.bf16.mxu0 %v623
    %887 = vmatmul.mubr.bf16.gmra.mxu0 %v622
    %v888 = vpop.f32.mrf.mxu0
    %v889 = vadd.f32 0.0, %v888
    %v890 = vpop.f32.mrf.mxu0
    %v891 = vadd.f32 0.0, %v890
    %v892 = vpop.f32.mrf.mxu0
    %v893 = vadd.f32 0.0, %v892
    %v894 = vpop.f32.mrf.mxu0
    %v895 = vadd.f32 0.0, %v894
    %896 = vmatprep.mubr.bf16.mxu0 %v625
    %897 = vmatmul.mubr.bf16.gmra.mxu0 %v624
    %v898 = vpop.f32.mrf.mxu0
    %v899 = vadd.f32 0.0, %v898
    %v900 = vpop.f32.mrf.mxu0
    %v901 = vadd.f32 0.0, %v900
    %v902 = vpop.f32.mrf.mxu0
    %v903 = vadd.f32 0.0, %v902
    %v904 = vpop.f32.mrf.mxu0
    %v905 = vadd.f32 0.0, %v904
    %906 = vmatprep.mubr.bf16.mxu0 %v627
    %907 = vmatmul.mubr.bf16.gmra.mxu0 %v626
    %v908 = vpop.f32.mrf.mxu0
    %v909 = vadd.f32 0.0, %v908
    %v910 = vpop.f32.mrf.mxu0
    %v911 = vadd.f32 0.0, %v910
    %v912 = vpop.f32.mrf.mxu0
    %v913 = vadd.f32 0.0, %v912
    %v914 = vpop.f32.mrf.mxu0
    %v915 = vadd.f32 0.0, %v914
    %916 = vmatprep.mubr.bf16.mxu0 %v629
    %917 = vmatmul.mubr.bf16.gmra.mxu0 %v628
    %v918 = vpop.f32.mrf.mxu0
    %v919 = vadd.f32 0.0, %v918
    %v920 = vpop.f32.mrf.mxu0
    %v921 = vadd.f32 0.0, %v920
    %v922 = vpop.f32.mrf.mxu0
    %v923 = vadd.f32 0.0, %v922
    %v924 = vpop.f32.mrf.mxu0
    %v925 = vadd.f32 0.0, %v924
    %926 = vmatprep.mubr.bf16.mxu0 %v631
    %927 = vmatmul.mubr.bf16.gmra.mxu0 %v630
    %v928 = vpop.f32.mrf.mxu0
    %v929 = vadd.f32 0.0, %v928
    %v930 = vpop.f32.mrf.mxu0
    %v931 = vadd.f32 0.0, %v930
    %v932 = vpop.f32.mrf.mxu0
    %v933 = vadd.f32 0.0, %v932
    %v934 = vpop.f32.mrf.mxu0
    %v935 = vadd.f32 0.0, %v934
    %936 = vdwg.mxu0
    %v937 = vld [vmem:[#allocation10 + $0x4] sm:$0x3]
    %v938 = vld [vmem:[#allocation10 + $0x6] sm:$0x3]
    %v939 = vadd.f32 %v859, %v863
    %v940 = vadd.f32 %v939, %v869
    %v941 = vadd.f32 %v940, %v873
    %v942 = vadd.f32 %v941, %v879
    %v943 = vadd.f32 %v942, %v883
    %v944 = vadd.f32 %v943, %v889
    %v945 = vadd.f32 %v944, %v893
    %v946 = vadd.f32 %v945, %v899
    %v947 = vadd.f32 %v946, %v903
    %v948 = vadd.f32 %v947, %v909
    %v949 = vadd.f32 %v948, %v913
    %v950 = vadd.f32 %v949, %v919
    %v951 = vadd.f32 %v950, %v923
    %v952 = vadd.f32 %v951, %v929
    %v953 = vadd.f32 %v952, %v933
    %v954 = vrot.slane %v953, 4
    %v955 = vadd.f32 %v953, %v954
    %v956 = vrot.slane %v955, 2
    %v957 = vadd.f32 %v955, %v956
    %v958 = vrot.slane %v957, 1
    %v959 = vadd.f32 %v957, %v958
    %v960 = vadd.f32 %v861, %v865
    %v961 = vadd.f32 %v960, %v871
    %v962 = vadd.f32 %v961, %v875
    %v963 = vadd.f32 %v962, %v881
    %v964 = vadd.f32 %v963, %v885
    %v965 = vadd.f32 %v964, %v891
    %v966 = vadd.f32 %v965, %v895
    %v967 = vadd.f32 %v966, %v901
    %v968 = vadd.f32 %v967, %v905
    %v969 = vadd.f32 %v968, %v911
    %v970 = vadd.f32 %v969, %v915
    %v971 = vadd.f32 %v970, %v921
    %v972 = vadd.f32 %v971, %v925
    %v973 = vadd.f32 %v972, %v931
    %v974 = vadd.f32 %v973, %v935
    %v975 = vrot.slane %v974, 4
    %v976 = vadd.f32 %v974, %v975
    %v977 = vrot.slane %v976, 2
    %v978 = vadd.f32 %v976, %v977
    %v979 = vrot.slane %v978, 1
    %v980 = vadd.f32 %v978, %v979
    %v981 = vmul.f32 %v959, 0.0078125
    %v982 = vmul.f32 %v980, 0.0078125
    %v983 = vsub.f32 %v859, %v981
    %v984 = vsub.f32 %v861, %v982
    %v985 = vsub.f32 %v863, %v981
    %v986 = vsub.f32 %v865, %v982
    %v987 = vsub.f32 %v869, %v981
    %v988 = vsub.f32 %v871, %v982
    %v989 = vsub.f32 %v873, %v981
    %v990 = vsub.f32 %v875, %v982
    %v991 = vsub.f32 %v879, %v981
    %v992 = vsub.f32 %v881, %v982
    %v993 = vsub.f32 %v883, %v981
    %v994 = vsub.f32 %v885, %v982
    %v995 = vsub.f32 %v889, %v981
    %v996 = vsub.f32 %v891, %v982
    %v997 = vsub.f32 %v893, %v981
    %v998 = vsub.f32 %v895, %v982
    %v999 = vsub.f32 %v899, %v981
    %v1000 = vsub.f32 %v901, %v982
    %v1001 = vsub.f32 %v903, %v981
    %v1002 = vsub.f32 %v905, %v982
    %v1003 = vsub.f32 %v909, %v981
    %v1004 = vsub.f32 %v911, %v982
    %v1005 = vsub.f32 %v913, %v981
    %v1006 = vsub.f32 %v915, %v982
    %v1007 = vsub.f32 %v919, %v981
    %v1008 = vsub.f32 %v921, %v982
    %v1009 = vsub.f32 %v923, %v981
    %v1010 = vsub.f32 %v925, %v982
    %v1011 = vsub.f32 %v929, %v981
    %v1012 = vsub.f32 %v931, %v982
    %v1013 = vsub.f32 %v933, %v981
    %v1014 = vsub.f32 %v935, %v982
    %v1015 = vmul.f32 %v983, %v983
    %v1016 = vmul.f32 %v984, %v984
    %v1017 = vmul.f32 %v985, %v985
    %v1018 = vmul.f32 %v986, %v986
    %v1019 = vmul.f32 %v987, %v987
    %v1020 = vmul.f32 %v988, %v988
    %v1021 = vmul.f32 %v989, %v989
    %v1022 = vmul.f32 %v990, %v990
    %v1023 = vmul.f32 %v991, %v991
    %v1024 = vmul.f32 %v992, %v992
    %v1025 = vmul.f32 %v993, %v993
    %v1026 = vmul.f32 %v994, %v994
    %v1027 = vmul.f32 %v995, %v995
    %v1028 = vmul.f32 %v996, %v996
    %v1029 = vmul.f32 %v997, %v997
    %v1030 = vmul.f32 %v998, %v998
    %v1031 = vmul.f32 %v999, %v999
    %v1032 = vmul.f32 %v1000, %v1000
    %v1033 = vmul.f32 %v1001, %v1001
    %v1034 = vmul.f32 %v1002, %v1002
    %v1035 = vmul.f32 %v1003, %v1003
    %v1036 = vmul.f32 %v1004, %v1004
    %v1037 = vmul.f32 %v1005, %v1005
    %v1038 = vmul.f32 %v1006, %v1006
    %v1039 = vmul.f32 %v1007, %v1007
    %v1040 = vmul.f32 %v1008, %v1008
    %v1041 = vmul.f32 %v1009, %v1009
    %v1042 = vmul.f32 %v1010, %v1010
    %v1043 = vmul.f32 %v1011, %v1011
    %v1044 = vmul.f32 %v1012, %v1012
    %v1045 = vmul.f32 %v1013, %v1013
    %v1046 = vmul.f32 %v1014, %v1014
    %v1047 = vadd.f32 %v1015, %v1017
    %v1048 = vadd.f32 %v1047, %v1019
    %v1049 = vadd.f32 %v1048, %v1021
    %v1050 = vadd.f32 %v1049, %v1023
    %v1051 = vadd.f32 %v1050, %v1025
    %v1052 = vadd.f32 %v1051, %v1027
    %v1053 = vadd.f32 %v1052, %v1029
    %v1054 = vadd.f32 %v1053, %v1031
    %v1055 = vadd.f32 %v1054, %v1033
    %v1056 = vadd.f32 %v1055, %v1035
    %v1057 = vadd.f32 %v1056, %v1037
    %v1058 = vadd.f32 %v1057, %v1039
    %v1059 = vadd.f32 %v1058, %v1041
    %v1060 = vadd.f32 %v1059, %v1043
    %v1061 = vadd.f32 %v1060, %v1045
    %v1062 = vrot.slane %v1061, 4
    %v1063 = vadd.f32 %v1061, %v1062
    %v1064 = vrot.slane %v1063, 2
    %v1065 = vadd.f32 %v1063, %v1064
    %v1066 = vrot.slane %v1065, 1
    %v1067 = vadd.f32 %v1065, %v1066
    %v1068 = vadd.f32 %v1016, %v1018
    %v1069 = vadd.f32 %v1068, %v1020
    %v1070 = vadd.f32 %v1069, %v1022
    %v1071 = vadd.f32 %v1070, %v1024
    %v1072 = vadd.f32 %v1071, %v1026
    %v1073 = vadd.f32 %v1072, %v1028
    %v1074 = vadd.f32 %v1073, %v1030
    %v1075 = vadd.f32 %v1074, %v1032
    %v1076 = vadd.f32 %v1075, %v1034
    %v1077 = vadd.f32 %v1076, %v1036
    %v1078 = vadd.f32 %v1077, %v1038
    %v1079 = vadd.f32 %v1078, %v1040
    %v1080 = vadd.f32 %v1079, %v1042
    %v1081 = vadd.f32 %v1080, %v1044
    %v1082 = vadd.f32 %v1081, %v1046
    %v1083 = vrot.slane %v1082, 4
    %v1084 = vadd.f32 %v1082, %v1083
    %v1085 = vrot.slane %v1084, 2
    %v1086 = vadd.f32 %v1084, %v1085
    %v1087 = vrot.slane %v1086, 1
    %v1088 = vadd.f32 %v1086, %v1087
    %v1089 = vmul.f32 %v1067, 0.0078125
    %v1090 = vmul.f32 %v1088, 0.0078125
    %v1091 = vadd.f32 %v1089, 1e-05
    %v1092 = vadd.f32 %v1090, 1e-05
    %v1093 = vrsqrt.pop %v1091
    %v1094 = vrsqrt.pop %v1092
    %v1097 = vcombine.low %v1093, %v1094
    %v1099 = vunpack.c.l.s4 1966171168
    %v1100 = vunpack.c.0.s8 %v1099
    %v1101 = vlaneseq
    %v1102 = vshrl.u32 %v1101, 7
    %v1103 = vsub.s32 %v1100, %v1102
    %v1104 = vrot.slane %v1097, %v1103
    %v1106 = vunpack.c.l.s4 1966171168
    %v1107 = vunpack.c.0.s8 %v1106
    %v1108 = vlaneseq
    %v1109 = vshrl.u32 %v1108, 7
    %v1110 = vsub.s32 %v1107, %v1109
    %v1111 = vrot.slane %v1104, %v1110
    %v1113 = vmul.f32 %v937, %v1111
    %v1115 = vlaneseq
    %v1116 = vshrl.u32 %v1115, 7
    %v1117 = vsub.s32 0, %v1116
    %v1118 = vrot.slane %v1113, %v1117
    %v1119 = vlaneseq
    %v1120 = vshrl.u32 %v1119, 7
    %v1121 = vsub.s32 1, %v1120
    %v1122 = vrot.slane %v1113, %v1121
    %v1125 = vmul.f32 %v983, %v1118
    %v1126 = vmul.f32 %v984, %v1122
    %v1127 = vmul.f32 %v985, %v1118
    %v1128 = vmul.f32 %v986, %v1122
    %v1129 = vmul.f32 %v987, %v1118
    %v1130 = vmul.f32 %v988, %v1122
    %v1131 = vmul.f32 %v989, %v1118
    %v1132 = vmul.f32 %v990, %v1122
    %v1133 = vmul.f32 %v991, %v1118
    %v1134 = vmul.f32 %v992, %v1122
    %v1135 = vmul.f32 %v993, %v1118
    %v1136 = vmul.f32 %v994, %v1122
    %v1137 = vmul.f32 %v995, %v1118
    %v1138 = vmul.f32 %v996, %v1122
    %v1139 = vmul.f32 %v997, %v1118
    %v1140 = vmul.f32 %v998, %v1122
    %v1141 = vmul.f32 %v999, %v1118
    %v1142 = vmul.f32 %v1000, %v1122
    %v1143 = vmul.f32 %v1001, %v1118
    %v1144 = vmul.f32 %v1002, %v1122
    %v1145 = vmul.f32 %v1003, %v1118
    %v1146 = vmul.f32 %v1004, %v1122
    %v1147 = vmul.f32 %v1005, %v1118
    %v1148 = vmul.f32 %v1006, %v1122
    %v1149 = vmul.f32 %v1007, %v1118
    %v1150 = vmul.f32 %v1008, %v1122
    %v1151 = vmul.f32 %v1009, %v1118
    %v1152 = vmul.f32 %v1010, %v1122
    %v1153 = vmul.f32 %v1011, %v1118
    %v1154 = vmul.f32 %v1012, %v1122
    %v1155 = vmul.f32 %v1013, %v1118
    %v1156 = vmul.f32 %v1014, %v1122
    %v1158 = vlaneseq
    %v1159 = vshrl.u32 %v1158, 7
    %v1160 = vsub.s32 0, %v1159
    %v1161 = vrot.slane %v938, %v1160
    %v1162 = vlaneseq
    %v1163 = vshrl.u32 %v1162, 7
    %v1164 = vsub.s32 1, %v1163
    %v1165 = vrot.slane %v938, %v1164
    %v1168 = vadd.f32 %v1125, %v1161
    %v1169 = vadd.f32 %v1126, %v1165
    %v1170 = vadd.f32 %v1127, %v1161
    %v1171 = vadd.f32 %v1128, %v1165
    %v1172 = vadd.f32 %v1129, %v1161
    %v1173 = vadd.f32 %v1130, %v1165
    %v1174 = vadd.f32 %v1131, %v1161
    %v1175 = vadd.f32 %v1132, %v1165
    %v1176 = vadd.f32 %v1133, %v1161
    %v1177 = vadd.f32 %v1134, %v1165
    %v1178 = vadd.f32 %v1135, %v1161
    %v1179 = vadd.f32 %v1136, %v1165
    %v1180 = vadd.f32 %v1137, %v1161
    %v1181 = vadd.f32 %v1138, %v1165
    %v1182 = vadd.f32 %v1139, %v1161
    %v1183 = vadd.f32 %v1140, %v1165
    %v1184 = vadd.f32 %v1141, %v1161
    %v1185 = vadd.f32 %v1142, %v1165
    %v1186 = vadd.f32 %v1143, %v1161
    %v1187 = vadd.f32 %v1144, %v1165
    %v1188 = vadd.f32 %v1145, %v1161
    %v1189 = vadd.f32 %v1146, %v1165
    %v1190 = vadd.f32 %v1147, %v1161
    %v1191 = vadd.f32 %v1148, %v1165
    %v1192 = vadd.f32 %v1149, %v1161
    %v1193 = vadd.f32 %v1150, %v1165
    %v1194 = vadd.f32 %v1151, %v1161
    %v1195 = vadd.f32 %v1152, %v1165
    %v1196 = vadd.f32 %v1153, %v1161
    %v1197 = vadd.f32 %v1154, %v1165
    %v1198 = vadd.f32 %v1155, %v1161
    %v1199 = vadd.f32 %v1156, %v1165
    %v1200 = vmax.f32 %v1168, 0.0
    %v1201 = vmax.f32 %v1169, 0.0
    %v1202 = vmax.f32 %v1170, 0.0
    %v1203 = vmax.f32 %v1171, 0.0
    %v1204 = vmax.f32 %v1172, 0.0
    %v1205 = vmax.f32 %v1173, 0.0
    %v1206 = vmax.f32 %v1174, 0.0
    %v1207 = vmax.f32 %v1175, 0.0
    %v1208 = vmax.f32 %v1176, 0.0
    %v1209 = vmax.f32 %v1177, 0.0
    %v1210 = vmax.f32 %v1178, 0.0
    %v1211 = vmax.f32 %v1179, 0.0
    %v1212 = vmax.f32 %v1180, 0.0
    %v1213 = vmax.f32 %v1181, 0.0
    %v1214 = vmax.f32 %v1182, 0.0
    %v1215 = vmax.f32 %v1183, 0.0
    %v1216 = vmax.f32 %v1184, 0.0
    %v1217 = vmax.f32 %v1185, 0.0
    %v1218 = vmax.f32 %v1186, 0.0
    %v1219 = vmax.f32 %v1187, 0.0
    %v1220 = vmax.f32 %v1188, 0.0
    %v1221 = vmax.f32 %v1189, 0.0
    %v1222 = vmax.f32 %v1190, 0.0
    %v1223 = vmax.f32 %v1191, 0.0
    %v1224 = vmax.f32 %v1192, 0.0
    %v1225 = vmax.f32 %v1193, 0.0
    %v1226 = vmax.f32 %v1194, 0.0
    %v1227 = vmax.f32 %v1195, 0.0
    %v1228 = vmax.f32 %v1196, 0.0
    %v1229 = vmax.f32 %v1197, 0.0
    %v1230 = vmax.f32 %v1198, 0.0
    %v1231 = vmax.f32 %v1199, 0.0
    %v1232 = vpack.c.bf16 %v1202, %v1200
    %v1233 = vpack.c.bf16 %v1203, %v1201
    %v1234 = vpack.c.bf16 %v1206, %v1204
    %v1235 = vpack.c.bf16 %v1207, %v1205
    %v1236 = vpack.c.bf16 %v1210, %v1208
    %v1237 = vpack.c.bf16 %v1211, %v1209
    %v1238 = vpack.c.bf16 %v1214, %v1212
    %v1239 = vpack.c.bf16 %v1215, %v1213
    %v1240 = vpack.c.bf16 %v1218, %v1216
    %v1241 = vpack.c.bf16 %v1219, %v1217
    %v1242 = vpack.c.bf16 %v1222, %v1220
    %v1243 = vpack.c.bf16 %v1223, %v1221
    %v1244 = vpack.c.bf16 %v1226, %v1224
    %v1245 = vpack.c.bf16 %v1227, %v1225
    %v1246 = vpack.c.bf16 %v1230, %v1228
    %v1247 = vpack.c.bf16 %v1231, %v1229
    %v1248 = vld [vmem:[#allocation10 + $0x8] sm:$0x1]
    %v1249 = vld [vmem:[#allocation8] sm:$0xf]
    %v1250 = vld [vmem:[#allocation8 + $0x4] sm:$0xf]
    %v1251 = vld [vmem:[#allocation8 + $0x8] sm:$0xf]
    %v1252 = vld [vmem:[#allocation8 + $0xc] sm:$0xf]
    %v1253 = vld [vmem:[#allocation8 + $0x10] sm:$0xf]
    %v1254 = vld [vmem:[#allocation8 + $0x14] sm:$0xf]
    %v1255 = vld [vmem:[#allocation8 + $0x18] sm:$0xf]
    %v1256 = vld [vmem:[#allocation8 + $0x1c] sm:$0xf]
    %v1257 = vld [vmem:[#allocation8 + $0x20] sm:$0xf]
    %v1258 = vld [vmem:[#allocation8 + $0x24] sm:$0xf]
    %v1259 = vld [vmem:[#allocation8 + $0x28] sm:$0xf]
    %v1260 = vld [vmem:[#allocation8 + $0x2c] sm:$0xf]
    %v1261 = vld [vmem:[#allocation8 + $0x30] sm:$0xf]
    %v1262 = vld [vmem:[#allocation8 + $0x34] sm:$0xf]
    %v1263 = vld [vmem:[#allocation8 + $0x38] sm:$0xf]
    %v1264 = vld [vmem:[#allocation8 + $0x3c] sm:$0xf]
    %v1265 = vld [vmem:[#allocation8 + $0x40] sm:$0xf]
    %v1266 = vld [vmem:[#allocation8 + $0x44] sm:$0xf]
    %v1267 = vld [vmem:[#allocation8 + $0x48] sm:$0xf]
    %v1268 = vld [vmem:[#allocation8 + $0x4c] sm:$0xf]
    %v1269 = vld [vmem:[#allocation8 + $0x50] sm:$0xf]
    %v1270 = vld [vmem:[#allocation8 + $0x54] sm:$0xf]
    %v1271 = vld [vmem:[#allocation8 + $0x58] sm:$0xf]
    %v1272 = vld [vmem:[#allocation8 + $0x5c] sm:$0xf]
    %v1273 = vld [vmem:[#allocation8 + $0x60] sm:$0xf]
    %v1274 = vld [vmem:[#allocation8 + $0x64] sm:$0xf]
    %v1275 = vld [vmem:[#allocation8 + $0x68] sm:$0xf]
    %v1276 = vld [vmem:[#allocation8 + $0x6c] sm:$0xf]
    %v1277 = vld [vmem:[#allocation8 + $0x70] sm:$0xf]
    %v1278 = vld [vmem:[#allocation8 + $0x74] sm:$0xf]
    %v1279 = vld [vmem:[#allocation8 + $0x78] sm:$0xf]
    %v1280 = vld [vmem:[#allocation8 + $0x7c] sm:$0xf]
    %v1282 = vlaneseq
    %v1283 = vshrl.u32 %v1282, 7
    %v1284 = vsub.s32 0, %v1283
    %v1285 = vrot.slane %v1248, %v1284
    %v1319 = vunpack.c.l.b16 %v1249
    %v1320 = vunpack.c.l.b16 %v1250
    %v1321 = vunpack.c.l.b16 %v1251
    %v1322 = vunpack.c.l.b16 %v1252
    %v1323 = vunpack.c.l.b16 %v1253
    %v1324 = vunpack.c.l.b16 %v1254
    %v1325 = vunpack.c.l.b16 %v1255
    %v1326 = vunpack.c.l.b16 %v1256
    %v1327 = vunpack.c.l.b16 %v1257
    %v1328 = vunpack.c.l.b16 %v1258
    %v1329 = vunpack.c.l.b16 %v1259
    %v1330 = vunpack.c.l.b16 %v1260
    %v1331 = vunpack.c.l.b16 %v1261
    %v1332 = vunpack.c.l.b16 %v1262
    %v1333 = vunpack.c.l.b16 %v1263
    %v1334 = vunpack.c.l.b16 %v1264
    %v1335 = vunpack.c.l.b16 %v1265
    %v1336 = vunpack.c.l.b16 %v1266
    %v1337 = vunpack.c.l.b16 %v1267
    %v1338 = vunpack.c.l.b16 %v1268
    %v1339 = vunpack.c.l.b16 %v1269
    %v1340 = vunpack.c.l.b16 %v1270
    %v1341 = vunpack.c.l.b16 %v1271
    %v1342 = vunpack.c.l.b16 %v1272
    %v1343 = vunpack.c.l.b16 %v1273
    %v1344 = vunpack.c.l.b16 %v1274
    %v1345 = vunpack.c.l.b16 %v1275
    %v1346 = vunpack.c.l.b16 %v1276
    %v1347 = vunpack.c.l.b16 %v1277
    %v1348 = vunpack.c.l.b16 %v1278
    %v1349 = vunpack.c.l.b16 %v1279
    %v1350 = vunpack.c.l.b16 %v1280
    %v1351 = vpack.c.b16 %v1320, %v1319
    %v1352 = vpack.c.b16 %v1322, %v1321
    %v1353 = vpack.c.b16 %v1324, %v1323
    %v1354 = vpack.c.b16 %v1326, %v1325
    %v1355 = vpack.c.b16 %v1328, %v1327
    %v1356 = vpack.c.b16 %v1330, %v1329
    %v1357 = vpack.c.b16 %v1332, %v1331
    %v1358 = vpack.c.b16 %v1334, %v1333
    %v1359 = vpack.c.b16 %v1336, %v1335
    %v1360 = vpack.c.b16 %v1338, %v1337
    %v1361 = vpack.c.b16 %v1340, %v1339
    %v1362 = vpack.c.b16 %v1342, %v1341
    %v1363 = vpack.c.b16 %v1344, %v1343
    %v1364 = vpack.c.b16 %v1346, %v1345
    %v1365 = vpack.c.b16 %v1348, %v1347
    %v1366 = vpack.c.b16 %v1350, %v1349
    %1383 = vmatprep.subr.bf16.mxu0 0
    %1384 = vmatpush1.bf16.msra.mxu0 %v1358
    %1385 = vmatprep.subr.bf16.mxu0 0
    %1386 = vmatpush1.bf16.msra.mxu0 %v1357
    %1387 = vmatprep.subr.bf16.mxu0 0
    %1388 = vmatpush1.bf16.msra.mxu0 %v1356
    %1389 = vmatprep.subr.bf16.mxu0 0
    %1390 = vmatpush1.bf16.msra.mxu0 %v1355
    %1391 = vmatprep.subr.bf16.mxu0 0
    %1392 = vmatpush1.bf16.msra.mxu0 %v1354
    %1393 = vmatprep.subr.bf16.mxu0 0
    %1394 = vmatpush1.bf16.msra.mxu0 %v1353
    %1395 = vmatprep.subr.bf16.mxu0 0
    %1396 = vmatpush1.bf16.msra.mxu0 %v1352
    %1397 = vmatprep.subr.bf16.mxu0 0
    %1398 = vmatpush1.bf16.msra.mxu0 %v1351
    %1399 = vmatprep.subr.bf16.mxu0 0
    %1400 = vmatpush2.bf16.msra.mxu0 %v1366
    %1401 = vmatprep.subr.bf16.mxu0 0
    %1402 = vmatpush2.bf16.msra.mxu0 %v1365
    %1403 = vmatprep.subr.bf16.mxu0 0
    %1404 = vmatpush2.bf16.msra.mxu0 %v1364
    %1405 = vmatprep.subr.bf16.mxu0 0
    %1406 = vmatpush2.bf16.msra.mxu0 %v1363
    %1407 = vmatprep.subr.bf16.mxu0 0
    %1408 = vmatpush2.bf16.msra.mxu0 %v1362
    %1409 = vmatprep.subr.bf16.mxu0 0
    %1410 = vmatpush2.bf16.msra.mxu0 %v1361
    %1411 = vmatprep.subr.bf16.mxu0 0
    %1412 = vmatpush2.bf16.msra.mxu0 %v1360
    %1413 = vmatprep.subr.bf16.mxu0 0
    %1414 = vmatpush2.bf16.msra.mxu0 %v1359
    %1415 = vmatprep.mubr.bf16.mxu0 %v1233
    %1416 = vmatmul.mubr.bf16.gmra.mxu0 %v1232
    %v1417 = vpop.f32.mrf.mxu0
    %v1418 = vadd.f32 %v1285, %v1417
    %v1419 = vpop.f32.mrf.mxu0
    %v1420 = vpop.f32.mrf.mxu0
    %v1421 = vadd.f32 %v1285, %v1420
    %v1422 = vpop.f32.mrf.mxu0
    %1423 = vmatprep.mubr.bf16.mxu0 %v1235
    %1424 = vmatmul.mubr.bf16.gmra.mxu0 %v1234
    %v1425 = vpop.f32.mrf.mxu0
    %v1426 = vadd.f32 %v1285, %v1425
    %v1427 = vpop.f32.mrf.mxu0
    %v1428 = vpop.f32.mrf.mxu0
    %v1429 = vadd.f32 %v1285, %v1428
    %v1430 = vpop.f32.mrf.mxu0
    %1431 = vmatprep.mubr.bf16.mxu0 %v1237
    %1432 = vmatmul.mubr.bf16.gmra.mxu0 %v1236
    %v1433 = vpop.f32.mrf.mxu0
    %v1434 = vadd.f32 %v1285, %v1433
    %v1435 = vpop.f32.mrf.mxu0
    %v1436 = vpop.f32.mrf.mxu0
    %v1437 = vadd.f32 %v1285, %v1436
    %v1438 = vpop.f32.mrf.mxu0
    %1439 = vmatprep.mubr.bf16.mxu0 %v1239
    %1440 = vmatmul.mubr.bf16.gmra.mxu0 %v1238
    %v1441 = vpop.f32.mrf.mxu0
    %v1442 = vadd.f32 %v1285, %v1441
    %v1443 = vpop.f32.mrf.mxu0
    %v1444 = vpop.f32.mrf.mxu0
    %v1445 = vadd.f32 %v1285, %v1444
    %v1446 = vpop.f32.mrf.mxu0
    %1447 = vmatprep.mubr.bf16.mxu0 %v1241
    %1448 = vmatmul.mubr.bf16.gmra.mxu0 %v1240
    %v1449 = vpop.f32.mrf.mxu0
    %v1450 = vadd.f32 %v1285, %v1449
    %v1451 = vpop.f32.mrf.mxu0
    %v1452 = vpop.f32.mrf.mxu0
    %v1453 = vadd.f32 %v1285, %v1452
    %v1454 = vpop.f32.mrf.mxu0
    %1455 = vmatprep.mubr.bf16.mxu0 %v1243
    %1456 = vmatmul.mubr.bf16.gmra.mxu0 %v1242
    %v1457 = vpop.f32.mrf.mxu0
    %v1458 = vadd.f32 %v1285, %v1457
    %v1459 = vpop.f32.mrf.mxu0
    %v1460 = vpop.f32.mrf.mxu0
    %v1461 = vadd.f32 %v1285, %v1460
    %v1462 = vpop.f32.mrf.mxu0
    %1463 = vmatprep.mubr.bf16.mxu0 %v1245
    %1464 = vmatmul.mubr.bf16.gmra.mxu0 %v1244
    %v1465 = vpop.f32.mrf.mxu0
    %v1466 = vadd.f32 %v1285, %v1465
    %v1467 = vpop.f32.mrf.mxu0
    %v1468 = vpop.f32.mrf.mxu0
    %v1469 = vadd.f32 %v1285, %v1468
    %v1470 = vpop.f32.mrf.mxu0
    %1471 = vmatprep.mubr.bf16.mxu0 %v1247
    %1472 = vmatmul.mubr.bf16.gmra.mxu0 %v1246
    %v1473 = vpop.f32.mrf.mxu0
    %v1474 = vadd.f32 %v1285, %v1473
    %v1475 = vpop.f32.mrf.mxu0
    %v1476 = vpop.f32.mrf.mxu0
    %v1477 = vadd.f32 %v1285, %v1476
    %v1478 = vpop.f32.mrf.mxu0
    %1479 = vdwg.mxu0
    %v1480 = vadd.f32 %v1418, %v88
    %v1481 = vadd.f32 %v1421, %v89
    %v1482 = vadd.f32 %v1426, %v90
    %v1483 = vadd.f32 %v1429, %v91
    %v1484 = vadd.f32 %v1434, %v92
    %v1485 = vadd.f32 %v1437, %v93
    %v1486 = vadd.f32 %v1442, %v94
    %v1487 = vadd.f32 %v1445, %v95
    %v1488 = vadd.f32 %v1450, %v96
    %v1489 = vadd.f32 %v1453, %v97
    %v1490 = vadd.f32 %v1458, %v98
    %v1491 = vadd.f32 %v1461, %v99
    %v1492 = vadd.f32 %v1466, %v100
    %v1493 = vadd.f32 %v1469, %v101
    %v1494 = vadd.f32 %v1474, %v102
    %v1495 = vadd.f32 %v1477, %v103
    %1496 = vst [vmem:[#allocation11] sm:$0xff] %v1480
    %1497 = vst [vmem:[#allocation11 + $0x8] sm:$0xff] %v1481
    %1498 = vst [vmem:[#allocation11 + $0x10] sm:$0xff] %v1482
    %1499 = vst [vmem:[#allocation11 + $0x18] sm:$0xff] %v1483
    %1500 = vst [vmem:[#allocation11 + $0x20] sm:$0xff] %v1484
    %1501 = vst [vmem:[#allocation11 + $0x28] sm:$0xff] %v1485
    %1502 = vst [vmem:[#allocation11 + $0x30] sm:$0xff] %v1486
    %1503 = vst [vmem:[#allocation11 + $0x38] sm:$0xff] %v1487
    %1504 = vst [vmem:[#allocation11 + $0x40] sm:$0xff] %v1488
    %1505 = vst [vmem:[#allocation11 + $0x48] sm:$0xff] %v1489
    %1506 = vst [vmem:[#allocation11 + $0x50] sm:$0xff] %v1490
    %1507 = vst [vmem:[#allocation11 + $0x58] sm:$0xff] %v1491
    %1508 = vst [vmem:[#allocation11 + $0x60] sm:$0xff] %v1492
    %1509 = vst [vmem:[#allocation11 + $0x68] sm:$0xff] %v1493
    %1510 = vst [vmem:[#allocation11 + $0x70] sm:$0xff] %v1494
    %1511 = vst [vmem:[#allocation11 + $0x78] sm:$0xff] %v1495
    // Predicated region
    $region42: #{tpu_custom_call.1} parent=1 // pred_check
      _
    $region43: #{tpu_custom_call.1} parent=1 // pred_check_branch
      %1513 = sbr.rel (0) target = $region45
    $region44: #{tpu_custom_call.1} parent=1 // pred_region
      %s1515 = ssub.s32 2048, 2048
      %1516 = vsyncadd [#allocation4], %s1515
      %s1517 = sshll.u32 [#allocation11], 4
      %s1518 = int_to_ptr.vmem [resolvable:$true] %s1517
      %1523 = dma.vmem_to_hbm [thread:$0]  %s1518, 2048, %s5, [#allocation4], 128, 128, 8
    $region45: #{tpu_custom_call.1} parent=1 // pred_fallthru
      _
    // Predicated region
    $region46: #{tpu_custom_call.1} parent=1 // pred_check
      _
    $region47: #{tpu_custom_call.1} parent=1 // pred_check_branch
      %1525 = sbr.rel (0) target = $region49
    $region48: #{tpu_custom_call.1} parent=1 // pred_region
      %1526 = dma.done [#allocation4], 2048
    $region49: #{tpu_custom_call.1} parent=1 // pred_fallthru
      _
    %1527 = vsyncpa [#allocation3], 1
    %1528 = vsyncpa [#allocation6], 1
    %1529 = vsyncpa [#allocation9], 1
    %1530 = vsyncpa [#allocation4], 1

</llo_original>
